<compile_context>
chip_gen: v6e
topology: v6e:2x2x1
jax: 0.10.0
libtpu: 0.0.40
codegen_flags: <defaults>
</compile_context>

<pallas_src>
import functools

import jax
import jax.numpy as jnp
from jax import lax
from jax.experimental import pallas as pl
from jax.experimental.pallas import tpu as pltpu

LANE = 128          # TPU lane width
SUBLANE_BF16 = 16   # bf16 sublane packing


def _round_up(n, m):
    return ((n + m - 1) // m) * m


def _mlp_kernel(*refs, num_hidden_layers):
    # refs = (x_ref, w1, b1, ..., w_h, b_h, wo_row, bo, o_ref)
    x_ref = refs[0]
    o_ref = refs[-1]
    param_refs = refs[1:-1]

    # Cast f32 -> bf16 on the VPU (free filler under DMA); halves MXU input width.
    h = x_ref[...].astype(jnp.bfloat16)

    # Hidden layers: Linear -> ReLU -> Dropout (identity at inference).
    # MXU matmul with f32 accumulation; bias add + ReLU in f32; back to bf16 for next matmul.
    for layer in range(num_hidden_layers):
        w_ref = param_refs[2 * layer]
        b_ref = param_refs[2 * layer + 1]
        acc = jnp.dot(h, w_ref[...], preferred_element_type=jnp.float32) + b_ref[...]
        h = jnp.maximum(acc, 0.0).astype(jnp.bfloat16)

    # Output layer (units -> 1): (1, U) x (TB, U)^T on the MXU produces a lane-dense (1, TB)
    # logit row directly (padded weight columns are exactly zero, so the sum is exact), then
    # sigmoid in f32 and a single packed f32 per batch row is stored.
    wo_ref = param_refs[2 * num_hidden_layers]       # (1, units_pad) bf16
    bo_ref = param_refs[2 * num_hidden_layers + 1]   # (1, 1) f32
    logit = lax.dot_general(
        wo_ref[...], h,
        dimension_numbers=(((1,), (1,)), ((), ())),
        preferred_element_type=jnp.float32,
    ) + bo_ref[...]                                   # (1, TB) f32
    o_ref[...] = jax.nn.sigmoid(logit).reshape(o_ref.shape).astype(o_ref.dtype)


def mlp_binary_classifier_forward(x, params, hidden_layers, *, tb=1024,
                                  single_buffer_weights=False):
    """Forward pass of the MLPBinaryClassifier head (eval-mode dropout).

    x:       [batch, in_features] float32
    params:  list of (W, b), W in (in, out) layout (transpose of PyTorch's (out, in))
    returns: [batch, 1] float32 sigmoid probabilities
    """
    if hidden_layers == 0:
        # Mirrors the PyTorch module: forward returns x unchanged when hidden_layers == 0.
        return x

    batch, in_features = x.shape

    # --- batch tiling: multiple of 16 (bf16 sublane packing); prefer >= 2 tiles so the
    #     "parallel" grid axis can use both TensorCores on v7x (no-op on v5e/v6e) ---
    batch16 = _round_up(batch, SUBLANE_BF16)
    tb = max(SUBLANE_BF16, (int(tb) // SUBLANE_BF16) * SUBLANE_BF16)
    if tb >= batch16:
        tb = batch16 if batch16 < 2 * SUBLANE_BF16 else _round_up(batch16 // 2, SUBLANE_BF16)
    batch_pad = _round_up(batch16, tb)
    num_tiles = batch_pad // tb

    # --- x stays f32: pad the batch axis only; cast to bf16 inside the kernel ---
    x_p = x if batch_pad == batch else jnp.pad(x, ((0, batch_pad - batch), (0, 0)))

    # --- hidden-layer params: bf16 weights (lane-padded cols), f32 (1, N) biases ---
    flat_params = []
    for li, (w, b) in enumerate(params[:-1]):
        din, dout = w.shape
        din_p = din if li == 0 else _round_up(din, LANE)  # layer 0 contracts raw in_features
        dout_p = _round_up(dout, LANE)
        w_p = jnp.pad(w, ((0, din_p - din), (0, dout_p - dout))).astype(jnp.bfloat16)
        b_p = jnp.pad(b.reshape(1, -1), ((0, 0), (0, dout_p - dout))).astype(jnp.float32)
        flat_params += [w_p, b_p]

    # --- output layer (units -> 1): weight as a (1, units_pad) bf16 row, (1, 1) f32 bias ---
    wo, bo = params[-1]
    units = wo.shape[0]
    units_p = _round_up(units, LANE)
    wo_row = jnp.pad(wo.reshape(1, -1), ((0, 0), (0, units_p - units))).astype(jnp.bfloat16)
    bo_s = bo.reshape(1, 1).astype(jnp.float32)
    flat_params += [wo_row, bo_s]

    kernel = functools.partial(_mlp_kernel, num_hidden_layers=hidden_layers)

    # --- BlockSpecs: x / out tiled over the batch grid axis, params VMEM-resident ---
    grid = (num_tiles,)
    in_specs = [pl.BlockSpec((tb, in_features), lambda i: (i, 0))]
    for p in flat_params:
        if single_buffer_weights:
            # For very large layers on v7x (64 MiB VMEM): constant blocks don't need 2 buffers.
            in_specs.append(pl.BlockSpec(tuple(p.shape), lambda i: (0, 0),
                                         pipeline_mode=pl.Buffered(1)))
        else:
            in_specs.append(pl.BlockSpec(tuple(p.shape), lambda i: (0, 0)))
    # Packed, lane-dense output: one f32 per batch row, stored as (num_tiles, 1, tb).
    out_specs = pl.BlockSpec((1, 1, tb), lambda i: (i, 0, 0))

    # --- advisory cost estimate (one sigmoid per row; f32 x read; packed f32 output) ---
    flops = sum(2 * batch_pad * int(w.shape[0]) * int(w.shape[1])
                for w in flat_params[0:-2:2])
    flops += 2 * batch_pad * units_p
    param_bytes = sum(int(p.size) * p.dtype.itemsize for p in flat_params)
    cost = pl.CostEstimate(
        flops=int(flops),
        transcendentals=int(batch_pad),
        bytes_accessed=int(x_p.size) * 4 + int(param_bytes) + int(batch_pad) * 4,
    )

    out = pl.pallas_call(
        kernel,
        out_shape=jax.ShapeDtypeStruct((num_tiles, 1, tb), jnp.float32),
        grid=grid,
        in_specs=in_specs,
        out_specs=out_specs,
        compiler_params=pltpu.CompilerParams(
            dimension_semantics=("parallel",),  # megacore: batch tiles across TCs (v7x)
        ),
        cost_estimate=cost,
    )(x_p, *flat_params)

    # Row i of tile t holds batch rows [t*tb, (t+1)*tb); flatten and drop batch padding.
    return out.reshape(batch_pad, 1)[:batch]


def init_params(key, in_features, hidden_layers, units_per_layer):
    """Deterministic parameter init (PyTorch nn.Linear-style uniform), (in, out) layout."""
    params = []
    dims = [in_features] + [units_per_layer] * hidden_layers + [1]
    for i in range(len(dims) - 1):
        fan_in, fan_out = dims[i], dims[i + 1]
        key, kw, kb = jax.random.split(key, 3)
        bound = 1.0 / jnp.sqrt(fan_in)
        w = jax.random.uniform(kw, (fan_in, fan_out), jnp.float32, -bound, bound)
        b = jax.random.uniform(kb, (fan_out,), jnp.float32, -bound, bound)
        params.append((w, b))
    return params


if __name__ == "__main__":
    key = jax.random.PRNGKey(0)

    # Shapes implied by CustomModel defaults: embed_dim=128, expand=1, hidden_layers=1
    # -> the MLP head sees [batch, 128] pooled features.
    batch = 32
    in_features = 128
    hidden_layers = 1
    units_per_layer = 128

    key, kx = jax.random.split(key)
    x = jax.random.normal(kx, (batch, in_features), jnp.float32)
    params = init_params(key, in_features, hidden_layers, units_per_layer)

    out = mlp_binary_classifier_forward(x, params, hidden_layers)
    out = jax.block_until_ready(out)

    # Pure-JAX reference with the same bf16 weights/activations + f32 accumulation.
    # NOTE: bf16 weights deviate from a pure-f32 PyTorch forward by ~1e-3 on sigmoid outputs.
    h = x.astype(jnp.bfloat16)
    for w, b in params[:-1]:
        acc = jnp.dot(h, w.astype(jnp.bfloat16), preferred_element_type=jnp.float32) + b
        h = jnp.maximum(acc, 0.0).astype(jnp.bfloat16)
    wo, bo = params[-1]
    ref = jax.nn.sigmoid(
        jnp.dot(h, wo.astype(jnp.bfloat16), preferred_element_type=jnp.float32) + bo
    )

    assert out.shape == (batch, 1), out.shape
    assert bool(jnp.allclose(out, ref, atol=2e-3)), "mismatch vs reference"

    print("KERNEL_OK")
</pallas_src>

<mosaic_0001>
module attributes {stable_mosaic.version = 11 : i64} {
  func.func @_mlp_kernel(%arg0: i32, %arg1: memref<16x128xf32, #tpu.memory_space<vmem>>, %arg2: memref<128x128xbf16, #tpu.memory_space<vmem>>, %arg3: memref<1x128xf32, #tpu.memory_space<vmem>>, %arg4: memref<1x128xbf16, #tpu.memory_space<vmem>>, %arg5: memref<1x1xf32, #tpu.memory_space<vmem>>, %arg6: memref<1x1x16xf32, #tpu.memory_space<vmem>>) attributes {dimension_semantics = [#tpu.dimension_semantics<parallel>], iteration_bounds = array<i64: 2>, scalar_prefetch = 0 : i64, scratch_operands = 0 : i64, tpu.core_type = #tpu.core_type<tc>, window_params = [{transform_indices = @transform_0, window_bounds = array<i64: 16, 128>}, {pipeline_mode = #tpu.pipeline_mode<synchronous>, transform_indices = @transform_1, window_bounds = array<i64: 128, 128>}, {pipeline_mode = #tpu.pipeline_mode<synchronous>, transform_indices = @transform_2, window_bounds = array<i64: 1, 128>}, {pipeline_mode = #tpu.pipeline_mode<synchronous>, transform_indices = @transform_3, window_bounds = array<i64: 1, 128>}, {pipeline_mode = #tpu.pipeline_mode<synchronous>, transform_indices = @transform_4, window_bounds = array<i64: 1, 1>}, {transform_indices = @transform_5, window_bounds = array<i64: 1, 1, 16>}]} {
    %c0 = arith.constant 0 : index
    %c0_0 = arith.constant 0 : index
    %0 = vector.load %arg1[%c0, %c0_0] : memref<16x128xf32, #tpu.memory_space<vmem>>, vector<16x128xf32>
    %1 = arith.truncf %0 : vector<16x128xf32> to vector<16x128xbf16>
    %c0_1 = arith.constant 0 : index
    %c0_2 = arith.constant 0 : index
    %2 = vector.load %arg2[%c0_1, %c0_2] : memref<128x128xbf16, #tpu.memory_space<vmem>>, vector<128x128xbf16>
    %cst = arith.constant dense<0.000000e+00> : vector<16x128xf32>
    %3 = tpu.matmul %1, %2, %cst {dimension_numbers = #tpu.dot_dimension_numbers<[1], [0], [0], [1], [0, 0, 1, 1], [], []>} : vector<16x128xbf16>, vector<128x128xbf16>, vector<16x128xf32> -> vector<16x128xf32>
    %c0_3 = arith.constant 0 : index
    %c0_4 = arith.constant 0 : index
    %4 = vector.load %arg3[%c0_3, %c0_4] : memref<1x128xf32, #tpu.memory_space<vmem>>, vector<1x128xf32>
    %5 = vector.broadcast %4 : vector<1x128xf32> to vector<16x128xf32>
    %6 = arith.addf %3, %5 : vector<16x128xf32>
    %cst_5 = arith.constant 0.000000e+00 : f32
    %7 = vector.broadcast %cst_5 : f32 to vector<16x128xf32>
    %8 = arith.maximumf %6, %7 : vector<16x128xf32>
    %9 = arith.truncf %8 : vector<16x128xf32> to vector<16x128xbf16>
    %c0_6 = arith.constant 0 : index
    %c0_7 = arith.constant 0 : index
    %10 = vector.load %arg4[%c0_6, %c0_7] : memref<1x128xbf16, #tpu.memory_space<vmem>>, vector<1x128xbf16>
    %cst_8 = arith.constant dense<0.000000e+00> : vector<1x16xf32>
    %11 = tpu.matmul %10, %9, %cst_8 {dimension_numbers = #tpu.dot_dimension_numbers<[1], [1], [0], [0], [0, 0, 1, 0], [], []>} : vector<1x128xbf16>, vector<16x128xbf16>, vector<1x16xf32> -> vector<1x16xf32>
    %c0_9 = arith.constant 0 : index
    %c0_10 = arith.constant 0 : index
    %12 = vector.load %arg5[%c0_9, %c0_10] : memref<1x1xf32, #tpu.memory_space<vmem>>, vector<1x1xf32>
    %13 = vector.broadcast %12 : vector<1x1xf32> to vector<1x16xf32>
    %14 = arith.addf %11, %13 : vector<1x16xf32>
    %15 = arith.negf %14 : vector<1x16xf32>
    %16 = math.exp %15 : vector<1x16xf32>
    %cst_11 = arith.constant 1.000000e+00 : f32
    %17 = vector.broadcast %cst_11 : f32 to vector<1x16xf32>
    %18 = arith.addf %17, %16 : vector<1x16xf32>
    %19 = arith.divf %17, %18 : vector<1x16xf32>
    %20 = vector.shape_cast %19 : vector<1x16xf32> to vector<1x1x16xf32>
    %c0_12 = arith.constant 0 : index
    %c0_13 = arith.constant 0 : index
    %c0_14 = arith.constant 0 : index
    %21 = vector.load %arg6[%c0_12, %c0_13, %c0_14] : memref<1x1x16xf32, #tpu.memory_space<vmem>>, vector<1x1x16xf32>
    tpu.vector_store %arg6[%c0_12, %c0_13, %c0_14], %20 {strides = array<i32>} : memref<1x1x16xf32, #tpu.memory_space<vmem>>, vector<1x1x16xf32>,
    return
  }
  func.func @transform_0(%arg0: i32) -> (i32, i32) {
    %c0_i32 = arith.constant 0 : i32
    %c0_i32_0 = arith.constant 0 : i32
    return %arg0, %c0_i32 : i32, i32
  }
  func.func @transform_1(%arg0: i32) -> (i32, i32) {
    %c0_i32 = arith.constant 0 : i32
    %c0_i32_0 = arith.constant 0 : i32
    %c0_i32_1 = arith.constant 0 : i32
    return %c0_i32, %c0_i32_0 : i32, i32
  }
  func.func @transform_2(%arg0: i32) -> (i32, i32) {
    %c0_i32 = arith.constant 0 : i32
    %c0_i32_0 = arith.constant 0 : i32
    %c0_i32_1 = arith.constant 0 : i32
    return %c0_i32, %c0_i32_0 : i32, i32
  }
  func.func @transform_3(%arg0: i32) -> (i32, i32) {
    %c0_i32 = arith.constant 0 : i32
    %c0_i32_0 = arith.constant 0 : i32
    %c0_i32_1 = arith.constant 0 : i32
    return %c0_i32, %c0_i32_0 : i32, i32
  }
  func.func @transform_4(%arg0: i32) -> (i32, i32) {
    %c0_i32 = arith.constant 0 : i32
    %c0_i32_0 = arith.constant 0 : i32
    %c0_i32_1 = arith.constant 0 : i32
    return %c0_i32, %c0_i32_0 : i32, i32
  }
  func.func @transform_5(%arg0: i32) -> (i32, i32, i32) {
    %c0_i32 = arith.constant 0 : i32
    %c0_i32_0 = arith.constant 0 : i32
    %c0_i32_1 = arith.constant 0 : i32
    return %arg0, %c0_i32, %c0_i32_0 : i32, i32, i32
  }
}

</mosaic_0001>

<llo_original>
// kernel: tpu_custom_call.1
$region0: #{tpu_custom_call.1}
  #allocation0 [shape = 'u32[]', space=smem, size = 0x4, offset = 0x4, fixed_abs, tag = 'smem constant byte address 0x4 - core index']
  #allocation1 [shape = 'u32[144,128]{1,0:T(1,128)}', space=vmem, size = 0x12000, scoped, tag = 'internal scratch']
  #allocation2 [shape = 'f32[1,1]{1,0:T(1,128)S(1)}', space=vmem, size = 0x200, scoped, tag = 'scoped memory for tpu_custom_call.1']
  %s0 = inlined_call_operand.hbm [shape: f32[32,128], index: 0, kind: input, shape index: {}]
  %s1 = inlined_call_operand.hbm [shape: bf16[128,128], index: 1, kind: input, shape index: {}]
  %s2 = inlined_call_operand.vmem [shape: f32[1,128], index: 2, kind: input, shape index: {}]
  %s3 = inlined_call_operand.vmem [shape: bf16[1,128], index: 3, kind: input, shape index: {}]
  %s4 = inlined_call_operand.<no memory space> [shape: f32[1,1], index: 4, kind: input, shape index: {}]
  %s5 = inlined_call_operand.hbm [shape: f32[2,1,16], index: 5, kind: output, shape index: {}]
  %s6 = sld [smem:[#allocation0]]
  $region61: #{tpu_custom_call.1} parent=0
    _
  %s8 = ssub.s32 1, %s6
  %s9 = scalar_select 0, %s8, %s6
  %v10 = vstv %s4
  %11 = vst [vmem:[#allocation2] sm:$0x1] %v10
  $region1: #{tpu_custom_call.1} parent=0
    #allocation3 [shape = 'u8[16384]{0}', space=vmem, size = 0x4000, scoped, tag = 'input window, operand 0']
    #allocation4 [shape = 's32[2]{0}', space=sflag, size = 0x8, scoped, tag = 'scoped memory for tpu_custom_call.1']
    #allocation5 [shape = 's32[2]{0}', space=sflag, size = 0x8, scoped, tag = 'scoped memory for tpu_custom_call.1']
    #allocation6 [shape = 'u8[32768]{0}', space=vmem, size = 0x8000, scoped, tag = 'input window, operand 1, single buffered']
    #allocation7 [shape = 's32[1]{0}', space=sflag, size = 0x4, scoped, tag = 'scoped memory for tpu_custom_call.1']
    #allocation8 [shape = 'u8[1024]{0}', space=vmem, size = 0x400, scoped, tag = 'output window, operand 0']
    %12 = vsyncpa [#allocation4], 0
    %s13 = scalar_lea.sflag [#allocation4], 1
    %14 = vsyncpa %s13, 0
    %15 = vsyncpa [#allocation7], 0
    %16 = vsyncpa [#allocation5], 0
    %s17 = scalar_lea.sflag [#allocation5], 1
    %18 = vsyncpa %s17, 0
    loop: start=0, step=1, limit=4
    $region2: #{tpu_custom_call.1} parent=1 // loop_pre_header
      _
    $region3: #{tpu_custom_call.1} parent=1 // loop_header
      %s20 = sphi 0, %s24
      %p21 = scmp.ge.s32.totalorder %s20, 4
      %s30 = sphi 0, %s32
      %s33 = sphi 0, %s30
      %s34 = sphi 0, %s33
      %s50 = sphi 0, %s34
      %s54 = sphi 0, %s54
      %s56 = sphi 0, %s54
      %s57 = sphi 0, %s56
      %s71 = sphi 0, %s57
      %s75 = sphi 0, %s75
      %s77 = sphi 0, %s75
      %s78 = sphi 0, %s77
      %s92 = sphi 0, %s78
      %s96 = sphi 0, %s96
      %s98 = sphi 0, %s96
      %s99 = sphi 0, %s98
      %s113 = sphi 0, %s99
      %s117 = sphi 0, %s117
      %s119 = sphi 0, %s117
      %s120 = sphi 0, %s119
      %s134 = sphi 0, %s120
      %s140 = sphi 0, %s142
      %s143 = sphi 0, %s140
      %s144 = sphi 0, %s143
      %s160 = sphi 0, %s144
    $region4: #{tpu_custom_call.1} parent=1 // loop_header_branch
      %23 = sbr.rel (%p21) target = $region8
    $region5: #{tpu_custom_call.1} parent=1 // loop_body
      %s25 = ssub.s32 %s20, 1
      %s26 = ssub.s32 %s20, 2
      %s27 = sadd.s32 %s20, 1
      %s28 = ssub.s32 %s20, %s27
      %p29 = scmp.eq.s32.totalorder %s28, 0
      %s31 = sadd.s32 %s30, 1
      %s32 = scalar_select %p29, %s30, %s31
      %p35 = pneg %p29
      %p36 = scmp.eq.s32.totalorder %s20, 1
      %p37 = por %p35, %p36
      %p38 = scmp.ne.s32.totalorder %s30, %s33
      %p39 = scmp.eq.s32.totalorder %s20, 0
      %p40 = por %p38, %p39
      %p41 = scmp.ne.s32.totalorder %s30, %s33
      %p42 = scmp.eq.s32.totalorder %s25, 1
      %p43 = por %p41, %p42
      %p44 = scmp.ne.s32.totalorder %s33, %s34
      %p45 = scmp.eq.s32.totalorder %s25, 0
      %p46 = por %p44, %p45
      %p47 = scmp.ne.s32.totalorder %s33, %s34
      %p48 = scmp.eq.s32.totalorder %s26, 1
      %p49 = por %p47, %p48
      %p51 = scmp.ne.s32.totalorder %s34, %s50
      %p52 = scmp.eq.s32.totalorder %s26, 0
      %p53 = por %p51, %p52
      %s55 = sadd.s32 %s54, 1
      %p58 = scmp.eq.s32.totalorder %s20, 1
      %p59 = scmp.ne.s32.totalorder %s54, %s56
      %p60 = scmp.eq.s32.totalorder %s20, 0
      %p61 = por %p59, %p60
      %p62 = scmp.ne.s32.totalorder %s54, %s56
      %p63 = scmp.eq.s32.totalorder %s25, 1
      %p64 = por %p62, %p63
      %p65 = scmp.ne.s32.totalorder %s56, %s57
      %p66 = scmp.eq.s32.totalorder %s25, 0
      %p67 = por %p65, %p66
      %p68 = scmp.ne.s32.totalorder %s56, %s57
      %p69 = scmp.eq.s32.totalorder %s26, 1
      %p70 = por %p68, %p69
      %p72 = scmp.ne.s32.totalorder %s57, %s71
      %p73 = scmp.eq.s32.totalorder %s26, 0
      %p74 = por %p72, %p73
      %s76 = sadd.s32 %s75, 1
      %p79 = scmp.eq.s32.totalorder %s20, 1
      %p80 = scmp.ne.s32.totalorder %s75, %s77
      %p81 = scmp.eq.s32.totalorder %s20, 0
      %p82 = por %p80, %p81
      %p83 = scmp.ne.s32.totalorder %s75, %s77
      %p84 = scmp.eq.s32.totalorder %s25, 1
      %p85 = por %p83, %p84
      %p86 = scmp.ne.s32.totalorder %s77, %s78
      %p87 = scmp.eq.s32.totalorder %s25, 0
      %p88 = por %p86, %p87
      %p89 = scmp.ne.s32.totalorder %s77, %s78
      %p90 = scmp.eq.s32.totalorder %s26, 1
      %p91 = por %p89, %p90
      %p93 = scmp.ne.s32.totalorder %s78, %s92
      %p94 = scmp.eq.s32.totalorder %s26, 0
      %p95 = por %p93, %p94
      %s97 = sadd.s32 %s96, 1
      %p100 = scmp.eq.s32.totalorder %s20, 1
      %p101 = scmp.ne.s32.totalorder %s96, %s98
      %p102 = scmp.eq.s32.totalorder %s20, 0
      %p103 = por %p101, %p102
      %p104 = scmp.ne.s32.totalorder %s96, %s98
      %p105 = scmp.eq.s32.totalorder %s25, 1
      %p106 = por %p104, %p105
      %p107 = scmp.ne.s32.totalorder %s98, %s99
      %p108 = scmp.eq.s32.totalorder %s25, 0
      %p109 = por %p107, %p108
      %p110 = scmp.ne.s32.totalorder %s98, %s99
      %p111 = scmp.eq.s32.totalorder %s26, 1
      %p112 = por %p110, %p111
      %p114 = scmp.ne.s32.totalorder %s99, %s113
      %p115 = scmp.eq.s32.totalorder %s26, 0
      %p116 = por %p114, %p115
      %s118 = sadd.s32 %s117, 1
      %p121 = scmp.eq.s32.totalorder %s20, 1
      %p122 = scmp.ne.s32.totalorder %s117, %s119
      %p123 = scmp.eq.s32.totalorder %s20, 0
      %p124 = por %p122, %p123
      %p125 = scmp.ne.s32.totalorder %s117, %s119
      %p126 = scmp.eq.s32.totalorder %s25, 1
      %p127 = por %p125, %p126
      %p128 = scmp.ne.s32.totalorder %s119, %s120
      %p129 = scmp.eq.s32.totalorder %s25, 0
      %p130 = por %p128, %p129
      %p131 = scmp.ne.s32.totalorder %s119, %s120
      %p132 = scmp.eq.s32.totalorder %s26, 1
      %p133 = por %p131, %p132
      %p135 = scmp.ne.s32.totalorder %s120, %s134
      %p136 = scmp.eq.s32.totalorder %s26, 0
      %p137 = por %p135, %p136
      %s138 = ssub.s32 %s20, %s27
      %p139 = scmp.eq.s32.totalorder %s138, 0
      %s141 = sadd.s32 %s140, 1
      %s142 = scalar_select %p139, %s140, %s141
      %p145 = pneg %p139
      %p146 = scmp.eq.s32.totalorder %s20, 1
      %p147 = por %p145, %p146
      %p148 = scmp.ne.s32.totalorder %s140, %s143
      %p149 = scmp.eq.s32.totalorder %s20, 0
      %p150 = por %p148, %p149
      %p151 = scmp.ne.s32.totalorder %s140, %s143
      %p152 = scmp.eq.s32.totalorder %s25, 1
      %p153 = por %p151, %p152
      %p154 = scmp.ne.s32.totalorder %s143, %s144
      %p155 = scmp.eq.s32.totalorder %s25, 0
      %p156 = por %p154, %p155
      %p157 = scmp.ne.s32.totalorder %s143, %s144
      %p158 = scmp.eq.s32.totalorder %s26, 1
      %p159 = por %p157, %p158
      %p161 = scmp.ne.s32.totalorder %s144, %s160
      %p162 = scmp.eq.s32.totalorder %s26, 0
      %p163 = por %p161, %p162
      %p164 = scmp.le.s32.totalorder 1, %s20
      %p165 = scmp.lt.s32.totalorder %s20, 3
      %p166 = pnand %p164, %p165
      %p167 = pneg %p166
      // Predicated region
      $region9: #{tpu_custom_call.1} parent=5 // pred_check
        _
      $region10: #{tpu_custom_call.1} parent=5 // pred_check_branch
        %169 = sbr.rel (%p166) target = $region12
      $region11: #{tpu_custom_call.1} parent=5 // pred_region
        %s170 = ssub.s32 %s20, 1
        // Predicated region
        $region13: #{tpu_custom_call.1} parent=11 // pred_check
          %p171 = pneg %p67
        $region14: #{tpu_custom_call.1} parent=11 // pred_check_branch
          %173 = sbr.rel (%p171) target = $region16
        $region15: #{tpu_custom_call.1} parent=11 // pred_region
          %s175 = ssub.s32 1024, 1024
          %176 = vsyncadd [#allocation7], %s175
          %s177 = sshll.u32 [#allocation6], 4
          %s178 = int_to_ptr.vmem [resolvable:$true] %s177
          %183 = dma.hbm_to_vmem [thread:$0]  %s1, 1024, %s178, [#allocation7], 64, 64, 4
        $region16: #{tpu_custom_call.1} parent=11 // pred_fallthru
          _
        // Predicated region
        $region17: #{tpu_custom_call.1} parent=11 // pred_check
          %p184 = pneg %p88
        $region18: #{tpu_custom_call.1} parent=11 // pred_check_branch
          %186 = sbr.rel (%p184) target = $region20
        $region19: #{tpu_custom_call.1} parent=11 // pred_region
          _
        $region20: #{tpu_custom_call.1} parent=11 // pred_fallthru
          _
        // Predicated region
        $region21: #{tpu_custom_call.1} parent=11 // pred_check
          %p187 = pneg %p109
        $region22: #{tpu_custom_call.1} parent=11 // pred_check_branch
          %189 = sbr.rel (%p187) target = $region24
        $region23: #{tpu_custom_call.1} parent=11 // pred_region
          _
        $region24: #{tpu_custom_call.1} parent=11 // pred_fallthru
          _
        // Predicated region
        $region25: #{tpu_custom_call.1} parent=11 // pred_check
          %p190 = pneg %p130
        $region26: #{tpu_custom_call.1} parent=11 // pred_check_branch
          %192 = sbr.rel (%p190) target = $region28
        $region27: #{tpu_custom_call.1} parent=11 // pred_region
          _
        $region28: #{tpu_custom_call.1} parent=11 // pred_fallthru
          _
      $region12: #{tpu_custom_call.1} parent=5 // pred_fallthru
        _
      %p193 = scmp.lt.s32.totalorder %s20, 2
      // Predicated region
      $region29: #{tpu_custom_call.1} parent=5 // pred_check
        %p194 = pneg %p193
      $region30: #{tpu_custom_call.1} parent=5 // pred_check_branch
        %196 = sbr.rel (%p194) target = $region32
      $region31: #{tpu_custom_call.1} parent=5 // pred_region
        // Predicated region
        $region33: #{tpu_custom_call.1} parent=31 // pred_check
          %p197 = pneg %p40
        $region34: #{tpu_custom_call.1} parent=31 // pred_check_branch
          %199 = sbr.rel (%p197) target = $region36
        $region35: #{tpu_custom_call.1} parent=31 // pred_region
          %s200 = sand.u32 %s30, 1
          %s201 = scalar_lea.sflag [#allocation4], %s200
          %s202 = sand.u32 %s30, 1
          %s203 = smul.addr %s202, 16
          %s204 = scalar_lea.vmem [#allocation3], %s203
          %s205 = smul.u32 2, %s20
          %s207 = ssub.s32 256, 256
          %208 = vsyncadd %s201, %s207
          %s209 = smul.addr %s205, 128
          %s210 = scalar_lea.hbm %s0, %s209
          %s211 = sshll.u32 %s204, 4
          %s212 = int_to_ptr.vmem [resolvable:$true] %s211
          %217 = dma.hbm_to_vmem [thread:$0]  %s210, 256, %s212, %s201, 128, 128, 8
        $region36: #{tpu_custom_call.1} parent=31 // pred_fallthru
          _
      $region32: #{tpu_custom_call.1} parent=5 // pred_fallthru
        _
      %p218 = scmp.le.s32.totalorder 1, %s20
      %p219 = scmp.lt.s32.totalorder %s20, 3
      %p220 = pnand %p218, %p219
      %p221 = pneg %p220
      // Predicated region
      $region37: #{tpu_custom_call.1} parent=5 // pred_check
        _
      $region38: #{tpu_custom_call.1} parent=5 // pred_check_branch
        %223 = sbr.rel (%p220) target = $region40
      $region39: #{tpu_custom_call.1} parent=5 // pred_region
        %s224 = ssub.s32 %s20, 1
        %s225 = sand.u32 %s33, 1
        %s226 = scalar_lea.sflag [#allocation4], %s225
        %s227 = sand.u32 %s33, 1
        %s228 = smul.addr %s227, 16
        %s229 = scalar_lea.vmem [#allocation3], %s228
        // Predicated region
        $region41: #{tpu_custom_call.1} parent=39 // pred_check
          %p230 = pneg %p46
        $region42: #{tpu_custom_call.1} parent=39 // pred_check_branch
          %232 = sbr.rel (%p230) target = $region44
        $region43: #{tpu_custom_call.1} parent=39 // pred_region
          %233 = dma.done %s226, 256
        $region44: #{tpu_custom_call.1} parent=39 // pred_fallthru
          _
        // Predicated region
        $region45: #{tpu_custom_call.1} parent=39 // pred_check
          %p234 = pneg %p67
        $region46: #{tpu_custom_call.1} parent=39 // pred_check_branch
          %236 = sbr.rel (%p234) target = $region48
        $region47: #{tpu_custom_call.1} parent=39 // pred_region
          %237 = dma.done [#allocation7], 1024
        $region48: #{tpu_custom_call.1} parent=39 // pred_fallthru
          _
        %s238 = sand.u32 %s33, 1
        %s239 = scalar_lea.sflag [#allocation4], %s238
        %s240 = sand.u32 %s33, 1
        %s241 = smul.addr %s240, 16
        %s242 = scalar_lea.vmem [#allocation3], %s241
        %p243 = pneg %p46
        %p244 = pneg %p43
        %p245 = pneg %p67
        %p246 = pneg %p64
        %p247 = pneg %p88
        %p248 = pneg %p85
        %p249 = pneg %p109
        %p250 = pneg %p106
        %p251 = pneg %p130
        %p252 = pneg %p127
        %p253 = pneg %p156
        %p254 = pneg %p153
        %s255 = sand.u32 %s143, 1
        %s256 = scalar_lea.sflag [#allocation5], %s255
        %s257 = sand.u32 %s143, 1
        %s258 = scalar_lea.vmem [#allocation8], %s257
        %s259 = smul.u32 2, %s25
        %v261 = vld [vmem:[%s229] sm:$0xff]
        %v262 = vld [vmem:[%s229 + $0x8] sm:$0xff]
        %v263 = vpack.c.bf16 %v262, %v261
        %v264 = vld [vmem:[#allocation6] sm:$0xf]
        %v265 = vld [vmem:[#allocation6 + $0x4] sm:$0xf]
        %v266 = vld [vmem:[#allocation6 + $0x8] sm:$0xf]
        %v267 = vld [vmem:[#allocation6 + $0xc] sm:$0xf]
        %v268 = vld [vmem:[#allocation6 + $0x10] sm:$0xf]
        %v269 = vld [vmem:[#allocation6 + $0x14] sm:$0xf]
        %v270 = vld [vmem:[#allocation6 + $0x18] sm:$0xf]
        %v271 = vld [vmem:[#allocation6 + $0x1c] sm:$0xf]
        %v272 = vld [vmem:[#allocation6 + $0x20] sm:$0xf]
        %v273 = vld [vmem:[#allocation6 + $0x24] sm:$0xf]
        %v274 = vld [vmem:[#allocation6 + $0x28] sm:$0xf]
        %v275 = vld [vmem:[#allocation6 + $0x2c] sm:$0xf]
        %v276 = vld [vmem:[#allocation6 + $0x30] sm:$0xf]
        %v277 = vld [vmem:[#allocation6 + $0x34] sm:$0xf]
        %v278 = vld [vmem:[#allocation6 + $0x38] sm:$0xf]
        %v279 = vld [vmem:[#allocation6 + $0x3c] sm:$0xf]
        %v280 = vld [vmem:[%s2] sm:$0x1]
        %v282 = vlaneseq
        %v283 = vshrl.u32 %v282, 7
        %v284 = vsub.s32 0, %v283
        %v285 = vrot.slane %v280, %v284
        %v303 = vunpack.c.l.b16 %v264
        %v304 = vunpack.c.l.b16 %v265
        %v305 = vunpack.c.l.b16 %v266
        %v306 = vunpack.c.l.b16 %v267
        %v307 = vunpack.c.l.b16 %v268
        %v308 = vunpack.c.l.b16 %v269
        %v309 = vunpack.c.l.b16 %v270
        %v310 = vunpack.c.l.b16 %v271
        %v311 = vunpack.c.l.b16 %v272
        %v312 = vunpack.c.l.b16 %v273
        %v313 = vunpack.c.l.b16 %v274
        %v314 = vunpack.c.l.b16 %v275
        %v315 = vunpack.c.l.b16 %v276
        %v316 = vunpack.c.l.b16 %v277
        %v317 = vunpack.c.l.b16 %v278
        %v318 = vunpack.c.l.b16 %v279
        %v319 = vpack.c.b16 %v304, %v303
        %v320 = vpack.c.b16 %v306, %v305
        %v321 = vpack.c.b16 %v308, %v307
        %v322 = vpack.c.b16 %v310, %v309
        %v323 = vpack.c.b16 %v312, %v311
        %v324 = vpack.c.b16 %v314, %v313
        %v325 = vpack.c.b16 %v316, %v315
        %v326 = vpack.c.b16 %v318, %v317
        %335 = vmatprep.subr.bf16.mxu0 0
        %336 = vmatpush1.bf16.msra.mxu0 %v326
        %337 = vmatprep.subr.bf16.mxu0 0
        %338 = vmatpush1.bf16.msra.mxu0 %v325
        %339 = vmatprep.subr.bf16.mxu0 0
        %340 = vmatpush1.bf16.msra.mxu0 %v324
        %341 = vmatprep.subr.bf16.mxu0 0
        %342 = vmatpush1.bf16.msra.mxu0 %v323
        %343 = vmatprep.subr.bf16.mxu0 0
        %344 = vmatpush1.bf16.msra.mxu0 %v322
        %345 = vmatprep.subr.bf16.mxu0 0
        %346 = vmatpush1.bf16.msra.mxu0 %v321
        %347 = vmatprep.subr.bf16.mxu0 0
        %348 = vmatpush1.bf16.msra.mxu0 %v320
        %349 = vmatprep.subr.bf16.mxu0 0
        %350 = vmatpush1.bf16.msra.mxu0 %v319
        %351 = vmatprep.subr.bf16.mxu0 0
        %352 = vmatpush2.bf16.msra.mxu0 0
        %353 = vmatprep.subr.bf16.mxu0 0
        %354 = vmatpush2.bf16.msra.mxu0 0
        %355 = vmatprep.subr.bf16.mxu0 0
        %356 = vmatpush2.bf16.msra.mxu0 0
        %357 = vmatprep.subr.bf16.mxu0 0
        %358 = vmatpush2.bf16.msra.mxu0 0
        %359 = vmatprep.subr.bf16.mxu0 0
        %360 = vmatpush2.bf16.msra.mxu0 0
        %361 = vmatprep.subr.bf16.mxu0 0
        %362 = vmatpush2.bf16.msra.mxu0 0
        %363 = vmatprep.subr.bf16.mxu0 0
        %364 = vmatpush2.bf16.msra.mxu0 0
        %365 = vmatprep.subr.bf16.mxu0 0
        %366 = vmatpush2.bf16.msra.mxu0 0
        %367 = vmatprep.mubr.bf16.mxu0 0
        %368 = vmatmul.mubr.bf16.gmra.mxu0 %v263
        %v369 = vpop.f32.mrf.mxu0
        %v370 = vadd.f32 %v285, %v369
        %v371 = vpop.f32.mrf.mxu0
        %v372 = vpop.f32.mrf.mxu0
        %v373 = vadd.f32 %v285, %v372
        %v374 = vpop.f32.mrf.mxu0
        %375 = vdwg.mxu0
        %v376 = vmax.f32 %v370, 0.0
        %v377 = vmax.f32 %v373, 0.0
        %v378 = vpack.c.bf16 %v377, %v376
        %v379 = vld [vmem:[%s3] sm:$0x1]
        %v380 = vld [vmem:[#allocation2] sm:$0x1]
        %382 = vset.pattern.permute.xlu0 0
        %383 = vperm.xlu0 %382, %v380
        %v384 = vpop.permute.xlu0 %383
        %v386 = vlaneseq
        %v387 = vshrl.u32 %v386, 7
        %v388 = vsub.s32 0, %v387
        %v389 = vrot.slane %v384, %v388
        %390 = vmatprep.subr.bf16.mxu0 0
        %391 = vmatpush1.bf16.xpose.msra.mxu0 0
        %392 = vmatprep.subr.bf16.mxu0 0
        %393 = vmatpush1.bf16.xpose.msra.mxu0 0
        %394 = vmatprep.subr.bf16.mxu0 0
        %395 = vmatpush1.bf16.xpose.msra.mxu0 0
        %396 = vmatprep.subr.bf16.mxu0 0
        %397 = vmatpush1.bf16.xpose.msra.mxu0 0
        %398 = vmatprep.subr.bf16.mxu0 0
        %399 = vmatpush1.bf16.xpose.msra.mxu0 0
        %400 = vmatprep.subr.bf16.mxu0 0
        %401 = vmatpush1.bf16.xpose.msra.mxu0 0
        %402 = vmatprep.subr.bf16.mxu0 0
        %403 = vmatpush1.bf16.xpose.msra.mxu0 0
        %404 = vmatprep.subr.bf16.mxu0 0
        %405 = vmatpush1.bf16.xpose.msra.mxu0 %v378
        %406 = vmatprep.subr.bf16.mxu0 0
        %407 = vmatpush2.bf16.xpose.msra.mxu0 0
        %408 = vmatprep.subr.bf16.mxu0 0
        %409 = vmatpush2.bf16.xpose.msra.mxu0 0
        %410 = vmatprep.subr.bf16.mxu0 0
        %411 = vmatpush2.bf16.xpose.msra.mxu0 0
        %412 = vmatprep.subr.bf16.mxu0 0
        %413 = vmatpush2.bf16.xpose.msra.mxu0 0
        %414 = vmatprep.subr.bf16.mxu0 0
        %415 = vmatpush2.bf16.xpose.msra.mxu0 0
        %416 = vmatprep.subr.bf16.mxu0 0
        %417 = vmatpush2.bf16.xpose.msra.mxu0 0
        %418 = vmatprep.subr.bf16.mxu0 0
        %419 = vmatpush2.bf16.xpose.msra.mxu0 0
        %420 = vmatprep.subr.bf16.mxu0 0
        %421 = vmatpush2.bf16.xpose.msra.mxu0 0
        %422 = vmatprep.mubr.bf16.mxu0 0
        %423 = vmatmul.mubr.bf16.gmra.mxu0 %v379
        %v424 = vpop.f32.mrf.mxu0
        %v425 = vadd.f32 %v389, %v424
        %v426 = vpop.f32.mrf.mxu0
        %v427 = vpop.f32.mrf.mxu0
        %v428 = vpop.f32.mrf.mxu0
        %429 = vdwg.mxu0
        %v430 = vxor.u32 %v425, 2147483648
        %v431 = vmul.f32 %v430, 1.442695
        %v432 = vpow.pop %v431
        %v433 = vadd.f32 %v432, 1.0
        %v434 = vrcp.pop %v433
        %v435 = vmul.f32 1.0, %v434
        %vm436 = vcmask 122880
        %437 = vst.msk [vmem:[%s258] sm:$0x1] %vm436, %v435
        %s438 = sand.u32 %s143, 1
        %s439 = scalar_lea.sflag [#allocation5], %s438
        %s440 = sand.u32 %s143, 1
        %s441 = scalar_lea.vmem [#allocation8], %s440
        // Predicated region
        $region49: #{tpu_custom_call.1} parent=39 // pred_check
          %p442 = pneg %p153
        $region50: #{tpu_custom_call.1} parent=39 // pred_check_branch
          %444 = sbr.rel (%p442) target = $region52
        $region51: #{tpu_custom_call.1} parent=39 // pred_region
          %s446 = ssub.s32 16, 16
          %447 = vsyncadd %s439, %s446
          %s448 = smul.addr %s25, 16
          %s449 = scalar_lea.hbm %s5, %s448
          %s451 = sshll.u32 %s441, 4
          %s452 = int_to_ptr.vmem [resolvable:$true] %s451
          %454 = dma.vmem_to_hbm [thread:$0]  %s452, 16, %s449, %s439
        $region52: #{tpu_custom_call.1} parent=39 // pred_fallthru
          _
      $region40: #{tpu_custom_call.1} parent=5 // pred_fallthru
        _
      %p455 = scmp.le.s32.totalorder 2, %s20
      // Predicated region
      $region53: #{tpu_custom_call.1} parent=5 // pred_check
        %p456 = pneg %p455
      $region54: #{tpu_custom_call.1} parent=5 // pred_check_branch
        %458 = sbr.rel (%p456) target = $region56
      $region55: #{tpu_custom_call.1} parent=5 // pred_region
        %s459 = ssub.s32 %s20, 2
        // Predicated region
        $region57: #{tpu_custom_call.1} parent=55 // pred_check
          %p460 = pneg %p159
        $region58: #{tpu_custom_call.1} parent=55 // pred_check_branch
          %462 = sbr.rel (%p460) target = $region60
        $region59: #{tpu_custom_call.1} parent=55 // pred_region
          %s463 = sand.u32 %s144, 1
          %s464 = scalar_lea.sflag [#allocation5], %s463
          %s465 = sand.u32 %s144, 1
          %s466 = scalar_lea.vmem [#allocation8], %s465
          %467 = dma.done %s464, 16
        $region60: #{tpu_custom_call.1} parent=55 // pred_fallthru
          _
      $region56: #{tpu_custom_call.1} parent=5 // pred_fallthru
        _
    $region6: #{tpu_custom_call.1} parent=1 // loop_footer
      %s24 = sadd.s32 1, %s20
    $region7: #{tpu_custom_call.1} parent=1 // loop_footer_branch
      %19 = sbr.rel target = $region3
    $region8: #{tpu_custom_call.1} parent=1 // loop_exit
      _
    %468 = vsyncpa [#allocation4], 1
    %s469 = scalar_lea.sflag [#allocation4], 1
    %470 = vsyncpa %s469, 1
    %471 = vsyncpa [#allocation7], 1
    %472 = vsyncpa [#allocation5], 1
    %s473 = scalar_lea.sflag [#allocation5], 1
    %474 = vsyncpa %s473, 1

</llo_original>
